<compile_context>
chip_gen: v5e
topology: v5e:2x2
jax: 0.10.0
libtpu: 0.0.40
codegen_flags: <defaults>
</compile_context>

<pallas_src>
import jax
import jax.numpy as jnp
from jax.experimental import pallas as pl
from jax.experimental.pallas import tpu as pltpu


# ----------------------------- config ---------------------------------------
B = 8
OBS_DIM = 24
N_ACTION_DIM = 4
N_ACTION = 5
HIDDEN_DIM = 32
HIDDEN_DEPTH = 2                       # >= 1 (util.mlp with ReLU hidden layers)
D_MAX = OBS_DIM + N_ACTION_DIM * N_ACTION   # fixed autoregressive input width (44)


# ------------------------- parameter construction ---------------------------
def init_actor_params(seed=0):
    """Deterministic synthetic init: net i maps (obs_dim + i*n_action) -> n_action logits."""
    key = jax.random.PRNGKey(seed)
    nets = []
    for i in range(N_ACTION_DIM):
        dims = [OBS_DIM + i * N_ACTION] + [HIDDEN_DIM] * HIDDEN_DEPTH + [N_ACTION]
        layers = []
        for d_in, d_out in zip(dims[:-1], dims[1:]):
            key, wk = jax.random.split(key)
            W = jax.random.normal(wk, (d_in, d_out), jnp.float32) / jnp.sqrt(
                jnp.float32(d_in)
            )
            b = jnp.zeros((d_out,), jnp.float32)
            layers.append((W, b))
        nets.append(layers)
    return nets


def pack_params(nets):
    """Pack all nets into 3 stacked slabs (zero-padded) so the kernel needs 3 weight DMAs.

    W0   : [ND, D_MAX, H]        layer-0 weights, input rows for not-yet-sampled dims are 0
    WH   : [ND, HD, H, H]        slots 0..HD-2 = hidden H->H layers; slot HD-1 = output layer
                                 padded to H output columns (cols >= N_ACTION are 0)
    BALL : [ND, HD+1, H]         slot 0..HD-1 = hidden-layer biases; slot HD = output bias padded
    """
    assert HIDDEN_DEPTH >= 1  # TODO(synk): hidden_depth == 0 (single linear) not packed here
    ND, H, HD = N_ACTION_DIM, HIDDEN_DIM, HIDDEN_DEPTH
    W0 = jnp.zeros((ND, D_MAX, H), jnp.float32)
    WH = jnp.zeros((ND, HD, H, H), jnp.float32)
    BALL = jnp.zeros((ND, HD + 1, H), jnp.float32)
    for i, layers in enumerate(nets):
        w0, b0 = layers[0]
        W0 = W0.at[i, : w0.shape[0], :].set(w0)
        BALL = BALL.at[i, 0, :].set(b0)
        for l in range(1, HD):
            wl, bl = layers[l]
            WH = WH.at[i, l - 1].set(wl)
            BALL = BALL.at[i, l, :].set(bl)
        wout, bout = layers[HD]
        WH = WH.at[i, HD - 1, :, :N_ACTION].set(wout)
        BALL = BALL.at[i, HD, :N_ACTION].set(bout)
    return W0, WH, BALL


# ------------------------------ Pallas kernel --------------------------------
def make_kernel(batch):
    nd, na, hd = N_ACTION_DIM, N_ACTION, HIDDEN_DEPTH

    def kernel(obs_ref, u_ref, w0_ref, wh_ref, ball_ref, act_ref, lp_ref):
        # obs_ref is already zero-padded to width D_MAX; one-hot slots start at 0.
        x = obs_ref[...]                                                     # [B, D_MAX]
        u_all = u_ref[...]                                                   # [B, ND] (one VMEM load)
        col_ids = jax.lax.broadcasted_iota(jnp.int32, (batch, D_MAX), 1)     # lane ids
        cat_ids = jax.lax.broadcasted_iota(jnp.int32, (batch, na), 1)        # category ids
        dim_ids = jax.lax.broadcasted_iota(jnp.int32, (batch, nd), 1)        # action-dim ids
        # Upper-triangular ones matrix -> cumulative sum over categories via one tiny dot.
        rk = jax.lax.broadcasted_iota(jnp.int32, (na, na), 0)
        cj = jax.lax.broadcasted_iota(jnp.int32, (na, na), 1)
        tri = (rk <= cj).astype(jnp.float32)                                 # tri[k, j] = k <= j

        lp_total = jnp.zeros((batch, 1), jnp.float32)
        acts = jnp.zeros((batch, nd), jnp.int32)                             # register accumulator
        for i in range(nd):  # autoregressive chain, unrolled at trace time
            # ---- MLP: layer 0 over the fixed-width padded input (no concat) ----
            h = jnp.maximum(
                jnp.dot(x, w0_ref[i], preferred_element_type=jnp.float32)
                + ball_ref[i, 0:1, :],
                0.0,
            )
            for l in range(1, hd):  # remaining hidden layers
                h = jnp.maximum(
                    jnp.dot(h, wh_ref[i, l - 1], preferred_element_type=jnp.float32)
                    + ball_ref[i, l : l + 1, :],
                    0.0,
                )
            logits_full = (
                jnp.dot(h, wh_ref[i, hd - 1], preferred_element_type=jnp.float32)
                + ball_ref[i, hd : hd + 1, :]
            )                                                                # [B, H] (cols>=na are 0)
            logits = logits_full[:, :na]                                     # [B, na]

            # ---- Categorical sample via inverse CDF + log-prob ----
            m = jnp.max(logits, axis=-1, keepdims=True)                      # [B,1]
            e = jnp.exp(logits - m)                                          # [B,na]
            s = jnp.sum(e, axis=-1, keepdims=True)                           # [B,1]
            cdf = jnp.dot(e, tri, preferred_element_type=jnp.float32)        # unnormalized CDF
            u_i = u_all[:, i : i + 1]                                        # [B,1] (register slice)
            a_cnt = jnp.sum(
                (u_i * s >= cdf).astype(jnp.float32), axis=-1, keepdims=True
            )
            a_i = jnp.minimum(a_cnt.astype(jnp.int32), na - 1)               # [B,1] int32

            onehot = (cat_ids == a_i).astype(jnp.float32)                    # [B,na]
            lp_i = jnp.sum(onehot * logits, axis=-1, keepdims=True) - (
                jnp.log(s) + m
            )                                                                # logits[a] - logsumexp
            lp_total = lp_total + lp_i

            # Accumulate the sampled index into its column of the action tile (no per-dim store).
            acts = acts + jnp.where(dim_ids == i, a_i, 0)
            # Scatter the new one-hot into its (pre-zeroed) slot of the autoregressive input:
            # pure compare+add on one vreg tile, no concatenation / relayout.
            x = x + (col_ids == (OBS_DIM + i * na + a_i)).astype(jnp.float32)

        act_ref[...] = acts                                                  # single tile store
        lp_ref[...] = lp_total

    return kernel


def actor_forward(obs, u, packed):
    W0, WH, BALL = packed
    batch = obs.shape[0]
    # Pad obs once (outside the kernel) to the fixed autoregressive width.
    obs_pad = jnp.zeros((batch, D_MAX), jnp.float32).at[:, :OBS_DIM].set(obs)

    vmem = pl.BlockSpec(memory_space=pltpu.MemorySpace.VMEM)
    actions, lp = pl.pallas_call(
        make_kernel(batch),
        out_shape=(
            jax.ShapeDtypeStruct((batch, N_ACTION_DIM), jnp.int32),  # actions
            jax.ShapeDtypeStruct((batch, 1), jnp.float32),           # summed log-prob
        ),
        in_specs=[vmem] * 5,
        out_specs=(vmem, vmem),
    )(obs_pad, u, W0, WH, BALL)
    return actions, lp[:, 0]  # log_prob shape [B], as in the PyTorch module


# ---------------------------- pure-JAX reference ------------------------------
def ref_forward(obs, u, nets):
    hp = jax.lax.Precision.HIGHEST
    tri = jnp.triu(jnp.ones((N_ACTION, N_ACTION), jnp.float32))
    prev_onehots, acts, lps = [], [], []
    for i, layers in enumerate(nets):
        inp = obs if i == 0 else jnp.concatenate([obs] + prev_onehots, axis=-1)
        x = inp
        for l, (W, b) in enumerate(layers):
            x = jnp.dot(x, W, precision=hp) + b
            if l < len(layers) - 1:
                x = jnp.maximum(x, 0.0)
        logits = x                                                   # [B, na]
        m = jnp.max(logits, axis=-1, keepdims=True)
        e = jnp.exp(logits - m)
        s = jnp.sum(e, axis=-1, keepdims=True)
        cdf = jnp.dot(e, tri, precision=hp)
        u_i = u[:, i : i + 1]
        a_cnt = jnp.sum((u_i * s >= cdf).astype(jnp.int32), axis=-1)
        a_i = jnp.minimum(a_cnt, N_ACTION - 1)                       # [B]
        onehot = jax.nn.one_hot(a_i, N_ACTION, dtype=jnp.float32)
        lp_i = jnp.sum(onehot * logits, axis=-1) - (jnp.log(s[:, 0]) + m[:, 0])
        acts.append(a_i)
        lps.append(lp_i)
        prev_onehots.append(onehot)
    return jnp.stack(acts, axis=1).astype(jnp.int32), sum(lps)


# ------------------------------------ main ------------------------------------
if __name__ == "__main__":
    key = jax.random.PRNGKey(0)
    k_obs, k_u = jax.random.split(key)
    obs = jax.random.normal(k_obs, (B, OBS_DIM), jnp.float32)
    # Uniform draws for the categorical inverse-CDF sampler (one per action dim).
    u = jax.random.uniform(k_u, (B, N_ACTION_DIM), jnp.float32)

    nets = init_actor_params(seed=0)
    packed = pack_params(nets)

    actions, log_prob = jax.jit(actor_forward)(obs, u, packed)
    jax.block_until_ready((actions, log_prob))

    ref_actions, ref_log_prob = ref_forward(obs, u, nets)
    assert actions.shape == (B, N_ACTION_DIM)
    assert log_prob.shape == (B,)
    assert bool(jnp.all((actions >= 0) & (actions < N_ACTION)))
    assert bool(jnp.all(actions == ref_actions))
    assert jnp.allclose(log_prob, ref_log_prob, atol=1e-4, rtol=1e-4)

    print("KERNEL_OK")
</pallas_src>

<mosaic_0001>
module attributes {stable_mosaic.version = 11 : i64} {
  func.func @kernel(%arg0: memref<8x44xf32, #tpu.memory_space<vmem>>, %arg1: memref<8x4xf32, #tpu.memory_space<vmem>>, %arg2: memref<4x44x32xf32, #tpu.memory_space<vmem>>, %arg3: memref<4x2x32x32xf32, #tpu.memory_space<vmem>>, %arg4: memref<4x3x32xf32, #tpu.memory_space<vmem>>, %arg5: memref<8x4xi32, #tpu.memory_space<vmem>>, %arg6: memref<8x1xf32, #tpu.memory_space<vmem>>) attributes {dimension_semantics = [], scalar_prefetch = 0 : i64, scratch_operands = 0 : i64, tpu.core_type = #tpu.core_type<tc>} {
    %c0 = arith.constant 0 : index
    %c0_0 = arith.constant 0 : index
    %0 = vector.load %arg0[%c0, %c0_0] : memref<8x44xf32, #tpu.memory_space<vmem>>, vector<8x44xf32>
    %c0_1 = arith.constant 0 : index
    %c0_2 = arith.constant 0 : index
    %1 = vector.load %arg1[%c0_1, %c0_2] : memref<8x4xf32, #tpu.memory_space<vmem>>, vector<8x4xf32>
    %2 = tpu.iota {dimensions = array<i32: 1>} : vector<8x44xi32>
    %3 = tpu.iota {dimensions = array<i32: 1>} : vector<8x5xi32>
    %4 = tpu.iota {dimensions = array<i32: 1>} : vector<8x4xi32>
    %5 = tpu.iota {dimensions = array<i32: 0>} : vector<5x5xi32>
    %6 = tpu.iota {dimensions = array<i32: 1>} : vector<5x5xi32>
    %7 = arith.cmpi sle, %5, %6 : vector<5x5xi32>
    %8 = arith.extui %7 : vector<5x5xi1> to vector<5x5xi32>
    %9 = arith.sitofp %8 : vector<5x5xi32> to vector<5x5xf32>
    %cst = arith.constant 0.000000e+00 : f32
    %10 = vector.broadcast %cst : f32 to vector<8x1xf32>
    %c0_i32 = arith.constant 0 : i32
    %11 = vector.broadcast %c0_i32 : i32 to vector<8x4xi32>
    %c0_3 = arith.constant 0 : index
    %c0_4 = arith.constant 0 : index
    %c0_5 = arith.constant 0 : index
    %12 = vector.load %arg2[%c0_3, %c0_4, %c0_5] : memref<4x44x32xf32, #tpu.memory_space<vmem>>, vector<1x44x32xf32>
    %13 = vector.shape_cast %12 : vector<1x44x32xf32> to vector<44x32xf32>
    %cst_6 = arith.constant dense<0.000000e+00> : vector<8x32xf32>
    %14 = tpu.matmul %0, %13, %cst_6 {dimension_numbers = #tpu.dot_dimension_numbers<[1], [0], [0], [1], [0, 0, 1, 1], [], []>} : vector<8x44xf32>, vector<44x32xf32>, vector<8x32xf32> -> vector<8x32xf32>
    %c0_7 = arith.constant 0 : index
    %c0_8 = arith.constant 0 : index
    %c0_9 = arith.constant 0 : index
    %15 = vector.load %arg4[%c0_7, %c0_8, %c0_9] : memref<4x3x32xf32, #tpu.memory_space<vmem>>, vector<1x1x32xf32>
    %16 = vector.shape_cast %15 : vector<1x1x32xf32> to vector<1x32xf32>
    %17 = vector.broadcast %16 : vector<1x32xf32> to vector<8x32xf32>
    %18 = arith.addf %14, %17 : vector<8x32xf32>
    %cst_10 = arith.constant 0.000000e+00 : f32
    %19 = vector.broadcast %cst_10 : f32 to vector<8x32xf32>
    %20 = arith.maximumf %18, %19 : vector<8x32xf32>
    %c0_11 = arith.constant 0 : index
    %c0_12 = arith.constant 0 : index
    %c0_13 = arith.constant 0 : index
    %c0_14 = arith.constant 0 : index
    %21 = vector.load %arg3[%c0_11, %c0_12, %c0_13, %c0_14] : memref<4x2x32x32xf32, #tpu.memory_space<vmem>>, vector<1x1x32x32xf32>
    %22 = vector.shape_cast %21 : vector<1x1x32x32xf32> to vector<32x32xf32>
    %cst_15 = arith.constant dense<0.000000e+00> : vector<8x32xf32>
    %23 = tpu.matmul %20, %22, %cst_15 {dimension_numbers = #tpu.dot_dimension_numbers<[1], [0], [0], [1], [0, 0, 1, 1], [], []>} : vector<8x32xf32>, vector<32x32xf32>, vector<8x32xf32> -> vector<8x32xf32>
    %c0_16 = arith.constant 0 : index
    %c1 = arith.constant 1 : index
    %c0_17 = arith.constant 0 : index
    %24 = vector.load %arg4[%c0_16, %c1, %c0_17] : memref<4x3x32xf32, #tpu.memory_space<vmem>>, vector<1x1x32xf32>
    %25 = vector.shape_cast %24 : vector<1x1x32xf32> to vector<1x32xf32>
    %26 = vector.broadcast %25 : vector<1x32xf32> to vector<8x32xf32>
    %27 = arith.addf %23, %26 : vector<8x32xf32>
    %cst_18 = arith.constant 0.000000e+00 : f32
    %28 = vector.broadcast %cst_18 : f32 to vector<8x32xf32>
    %29 = arith.maximumf %27, %28 : vector<8x32xf32>
    %c0_19 = arith.constant 0 : index
    %c1_20 = arith.constant 1 : index
    %c0_21 = arith.constant 0 : index
    %c0_22 = arith.constant 0 : index
    %30 = vector.load %arg3[%c0_19, %c1_20, %c0_21, %c0_22] : memref<4x2x32x32xf32, #tpu.memory_space<vmem>>, vector<1x1x32x32xf32>
    %31 = vector.shape_cast %30 : vector<1x1x32x32xf32> to vector<32x32xf32>
    %cst_23 = arith.constant dense<0.000000e+00> : vector<8x32xf32>
    %32 = tpu.matmul %29, %31, %cst_23 {dimension_numbers = #tpu.dot_dimension_numbers<[1], [0], [0], [1], [0, 0, 1, 1], [], []>} : vector<8x32xf32>, vector<32x32xf32>, vector<8x32xf32> -> vector<8x32xf32>
    %c0_24 = arith.constant 0 : index
    %c2 = arith.constant 2 : index
    %c0_25 = arith.constant 0 : index
    %33 = vector.load %arg4[%c0_24, %c2, %c0_25] : memref<4x3x32xf32, #tpu.memory_space<vmem>>, vector<1x1x32xf32>
    %34 = vector.shape_cast %33 : vector<1x1x32xf32> to vector<1x32xf32>
    %35 = vector.broadcast %34 : vector<1x32xf32> to vector<8x32xf32>
    %36 = arith.addf %32, %35 : vector<8x32xf32>
    %37 = vector.extract_strided_slice %36 {offsets = [0, 0], sizes = [8, 5], strides = [1, 1]} : vector<8x32xf32> to vector<8x5xf32>
    %cst_26 = arith.constant dense<0xFF800000> : vector<8xf32>
    %38 = vector.multi_reduction <maximumf>, %37, %cst_26 [1] : vector<8x5xf32> to vector<8xf32>
    %39 = vector.shape_cast %38 : vector<8xf32> to vector<8x1xf32>
    %40 = vector.broadcast %39 : vector<8x1xf32> to vector<8x5xf32>
    %41 = arith.subf %37, %40 : vector<8x5xf32>
    %42 = math.exp %41 : vector<8x5xf32>
    %cst_27 = arith.constant dense<0.000000e+00> : vector<8xf32>
    %43 = vector.multi_reduction <add>, %42, %cst_27 [1] : vector<8x5xf32> to vector<8xf32>
    %44 = vector.shape_cast %43 : vector<8xf32> to vector<8x1xf32>
    %cst_28 = arith.constant dense<0.000000e+00> : vector<8x5xf32>
    %45 = tpu.matmul %42, %9, %cst_28 {dimension_numbers = #tpu.dot_dimension_numbers<[1], [0], [0], [1], [0, 0, 1, 1], [], []>} : vector<8x5xf32>, vector<5x5xf32>, vector<8x5xf32> -> vector<8x5xf32>
    %46 = vector.extract_strided_slice %1 {offsets = [0, 0], sizes = [8, 1], strides = [1, 1]} : vector<8x4xf32> to vector<8x1xf32>
    %47 = arith.mulf %46, %44 : vector<8x1xf32>
    %48 = vector.broadcast %47 : vector<8x1xf32> to vector<8x5xf32>
    %49 = arith.cmpf oge, %48, %45 : vector<8x5xf32>
    %50 = arith.extui %49 : vector<8x5xi1> to vector<8x5xi32>
    %51 = arith.sitofp %50 : vector<8x5xi32> to vector<8x5xf32>
    %cst_29 = arith.constant dense<0.000000e+00> : vector<8xf32>
    %52 = vector.multi_reduction <add>, %51, %cst_29 [1] : vector<8x5xf32> to vector<8xf32>
    %53 = vector.shape_cast %52 : vector<8xf32> to vector<8x1xf32>
    %54 = arith.fptosi %53 : vector<8x1xf32> to vector<8x1xi32>
    %c4_i32 = arith.constant 4 : i32
    %55 = vector.broadcast %c4_i32 : i32 to vector<8x1xi32>
    %56 = arith.minsi %54, %55 : vector<8x1xi32>
    %57 = vector.broadcast %56 : vector<8x1xi32> to vector<8x5xi32>
    %58 = arith.cmpi eq, %3, %57 : vector<8x5xi32>
    %59 = arith.extui %58 : vector<8x5xi1> to vector<8x5xi32>
    %60 = arith.sitofp %59 : vector<8x5xi32> to vector<8x5xf32>
    %61 = arith.mulf %60, %37 : vector<8x5xf32>
    %cst_30 = arith.constant dense<0.000000e+00> : vector<8xf32>
    %62 = vector.multi_reduction <add>, %61, %cst_30 [1] : vector<8x5xf32> to vector<8xf32>
    %63 = vector.shape_cast %62 : vector<8xf32> to vector<8x1xf32>
    %64 = math.log %44 : vector<8x1xf32>
    %65 = arith.addf %64, %39 : vector<8x1xf32>
    %66 = arith.subf %63, %65 : vector<8x1xf32>
    %67 = arith.addf %10, %66 : vector<8x1xf32>
    %c0_i32_31 = arith.constant 0 : i32
    %68 = vector.broadcast %c0_i32_31 : i32 to vector<8x4xi32>
    %69 = arith.cmpi eq, %4, %68 : vector<8x4xi32>
    %c0_i32_32 = arith.constant 0 : i32
    %70 = vector.shape_cast %56 : vector<8x1xi32> to vector<8x1xi32>
    %71 = vector.broadcast %70 : vector<8x1xi32> to vector<8x4xi32>
    %72 = vector.broadcast %c0_i32_32 : i32 to vector<8x4xi32>
    %73 = arith.select %69, %71, %72 : vector<8x4xi1>, vector<8x4xi32>
    %74 = arith.addi %11, %73 : vector<8x4xi32>
    %c24_i32 = arith.constant 24 : i32
    %75 = vector.broadcast %c24_i32 : i32 to vector<8x1xi32>
    %76 = arith.addi %75, %56 : vector<8x1xi32>
    %77 = vector.broadcast %76 : vector<8x1xi32> to vector<8x44xi32>
    %78 = arith.cmpi eq, %2, %77 : vector<8x44xi32>
    %79 = arith.extui %78 : vector<8x44xi1> to vector<8x44xi32>
    %80 = arith.sitofp %79 : vector<8x44xi32> to vector<8x44xf32>
    %81 = arith.addf %0, %80 : vector<8x44xf32>
    %c1_33 = arith.constant 1 : index
    %c0_34 = arith.constant 0 : index
    %c0_35 = arith.constant 0 : index
    %82 = vector.load %arg2[%c1_33, %c0_34, %c0_35] : memref<4x44x32xf32, #tpu.memory_space<vmem>>, vector<1x44x32xf32>
    %83 = vector.shape_cast %82 : vector<1x44x32xf32> to vector<44x32xf32>
    %cst_36 = arith.constant dense<0.000000e+00> : vector<8x32xf32>
    %84 = tpu.matmul %81, %83, %cst_36 {dimension_numbers = #tpu.dot_dimension_numbers<[1], [0], [0], [1], [0, 0, 1, 1], [], []>} : vector<8x44xf32>, vector<44x32xf32>, vector<8x32xf32> -> vector<8x32xf32>
    %c1_37 = arith.constant 1 : index
    %c0_38 = arith.constant 0 : index
    %c0_39 = arith.constant 0 : index
    %85 = vector.load %arg4[%c1_37, %c0_38, %c0_39] : memref<4x3x32xf32, #tpu.memory_space<vmem>>, vector<1x1x32xf32>
    %86 = vector.shape_cast %85 : vector<1x1x32xf32> to vector<1x32xf32>
    %87 = vector.broadcast %86 : vector<1x32xf32> to vector<8x32xf32>
    %88 = arith.addf %84, %87 : vector<8x32xf32>
    %cst_40 = arith.constant 0.000000e+00 : f32
    %89 = vector.broadcast %cst_40 : f32 to vector<8x32xf32>
    %90 = arith.maximumf %88, %89 : vector<8x32xf32>
    %c1_41 = arith.constant 1 : index
    %c0_42 = arith.constant 0 : index
    %c0_43 = arith.constant 0 : index
    %c0_44 = arith.constant 0 : index
    %91 = vector.load %arg3[%c1_41, %c0_42, %c0_43, %c0_44] : memref<4x2x32x32xf32, #tpu.memory_space<vmem>>, vector<1x1x32x32xf32>
    %92 = vector.shape_cast %91 : vector<1x1x32x32xf32> to vector<32x32xf32>
    %cst_45 = arith.constant dense<0.000000e+00> : vector<8x32xf32>
    %93 = tpu.matmul %90, %92, %cst_45 {dimension_numbers = #tpu.dot_dimension_numbers<[1], [0], [0], [1], [0, 0, 1, 1], [], []>} : vector<8x32xf32>, vector<32x32xf32>, vector<8x32xf32> -> vector<8x32xf32>
    %c1_46 = arith.constant 1 : index
    %c1_47 = arith.constant 1 : index
    %c0_48 = arith.constant 0 : index
    %94 = vector.load %arg4[%c1_46, %c1_47, %c0_48] : memref<4x3x32xf32, #tpu.memory_space<vmem>>, vector<1x1x32xf32>
    %95 = vector.shape_cast %94 : vector<1x1x32xf32> to vector<1x32xf32>
    %96 = vector.broadcast %95 : vector<1x32xf32> to vector<8x32xf32>
    %97 = arith.addf %93, %96 : vector<8x32xf32>
    %cst_49 = arith.constant 0.000000e+00 : f32
    %98 = vector.broadcast %cst_49 : f32 to vector<8x32xf32>
    %99 = arith.maximumf %97, %98 : vector<8x32xf32>
    %c1_50 = arith.constant 1 : index
    %c1_51 = arith.constant 1 : index
    %c0_52 = arith.constant 0 : index
    %c0_53 = arith.constant 0 : index
    %100 = vector.load %arg3[%c1_50, %c1_51, %c0_52, %c0_53] : memref<4x2x32x32xf32, #tpu.memory_space<vmem>>, vector<1x1x32x32xf32>
    %101 = vector.shape_cast %100 : vector<1x1x32x32xf32> to vector<32x32xf32>
    %cst_54 = arith.constant dense<0.000000e+00> : vector<8x32xf32>
    %102 = tpu.matmul %99, %101, %cst_54 {dimension_numbers = #tpu.dot_dimension_numbers<[1], [0], [0], [1], [0, 0, 1, 1], [], []>} : vector<8x32xf32>, vector<32x32xf32>, vector<8x32xf32> -> vector<8x32xf32>
    %c1_55 = arith.constant 1 : index
    %c2_56 = arith.constant 2 : index
    %c0_57 = arith.constant 0 : index
    %103 = vector.load %arg4[%c1_55, %c2_56, %c0_57] : memref<4x3x32xf32, #tpu.memory_space<vmem>>, vector<1x1x32xf32>
    %104 = vector.shape_cast %103 : vector<1x1x32xf32> to vector<1x32xf32>
    %105 = vector.broadcast %104 : vector<1x32xf32> to vector<8x32xf32>
    %106 = arith.addf %102, %105 : vector<8x32xf32>
    %107 = vector.extract_strided_slice %106 {offsets = [0, 0], sizes = [8, 5], strides = [1, 1]} : vector<8x32xf32> to vector<8x5xf32>
    %cst_58 = arith.constant dense<0xFF800000> : vector<8xf32>
    %108 = vector.multi_reduction <maximumf>, %107, %cst_58 [1] : vector<8x5xf32> to vector<8xf32>
    %109 = vector.shape_cast %108 : vector<8xf32> to vector<8x1xf32>
    %110 = vector.broadcast %109 : vector<8x1xf32> to vector<8x5xf32>
    %111 = arith.subf %107, %110 : vector<8x5xf32>
    %112 = math.exp %111 : vector<8x5xf32>
    %cst_59 = arith.constant dense<0.000000e+00> : vector<8xf32>
    %113 = vector.multi_reduction <add>, %112, %cst_59 [1] : vector<8x5xf32> to vector<8xf32>
    %114 = vector.shape_cast %113 : vector<8xf32> to vector<8x1xf32>
    %cst_60 = arith.constant dense<0.000000e+00> : vector<8x5xf32>
    %115 = tpu.matmul %112, %9, %cst_60 {dimension_numbers = #tpu.dot_dimension_numbers<[1], [0], [0], [1], [0, 0, 1, 1], [], []>} : vector<8x5xf32>, vector<5x5xf32>, vector<8x5xf32> -> vector<8x5xf32>
    %116 = vector.extract_strided_slice %1 {offsets = [0, 1], sizes = [8, 1], strides = [1, 1]} : vector<8x4xf32> to vector<8x1xf32>
    %117 = arith.mulf %116, %114 : vector<8x1xf32>
    %118 = vector.broadcast %117 : vector<8x1xf32> to vector<8x5xf32>
    %119 = arith.cmpf oge, %118, %115 : vector<8x5xf32>
    %120 = arith.extui %119 : vector<8x5xi1> to vector<8x5xi32>
    %121 = arith.sitofp %120 : vector<8x5xi32> to vector<8x5xf32>
    %cst_61 = arith.constant dense<0.000000e+00> : vector<8xf32>
    %122 = vector.multi_reduction <add>, %121, %cst_61 [1] : vector<8x5xf32> to vector<8xf32>
    %123 = vector.shape_cast %122 : vector<8xf32> to vector<8x1xf32>
    %124 = arith.fptosi %123 : vector<8x1xf32> to vector<8x1xi32>
    %c4_i32_62 = arith.constant 4 : i32
    %125 = vector.broadcast %c4_i32_62 : i32 to vector<8x1xi32>
    %126 = arith.minsi %124, %125 : vector<8x1xi32>
    %127 = vector.broadcast %126 : vector<8x1xi32> to vector<8x5xi32>
    %128 = arith.cmpi eq, %3, %127 : vector<8x5xi32>
    %129 = arith.extui %128 : vector<8x5xi1> to vector<8x5xi32>
    %130 = arith.sitofp %129 : vector<8x5xi32> to vector<8x5xf32>
    %131 = arith.mulf %130, %107 : vector<8x5xf32>
    %cst_63 = arith.constant dense<0.000000e+00> : vector<8xf32>
    %132 = vector.multi_reduction <add>, %131, %cst_63 [1] : vector<8x5xf32> to vector<8xf32>
    %133 = vector.shape_cast %132 : vector<8xf32> to vector<8x1xf32>
    %134 = math.log %114 : vector<8x1xf32>
    %135 = arith.addf %134, %109 : vector<8x1xf32>
    %136 = arith.subf %133, %135 : vector<8x1xf32>
    %137 = arith.addf %67, %136 : vector<8x1xf32>
    %c1_i32 = arith.constant 1 : i32
    %138 = vector.broadcast %c1_i32 : i32 to vector<8x4xi32>
    %139 = arith.cmpi eq, %4, %138 : vector<8x4xi32>
    %c0_i32_64 = arith.constant 0 : i32
    %140 = vector.shape_cast %126 : vector<8x1xi32> to vector<8x1xi32>
    %141 = vector.broadcast %140 : vector<8x1xi32> to vector<8x4xi32>
    %142 = vector.broadcast %c0_i32_64 : i32 to vector<8x4xi32>
    %143 = arith.select %139, %141, %142 : vector<8x4xi1>, vector<8x4xi32>
    %144 = arith.addi %74, %143 : vector<8x4xi32>
    %c29_i32 = arith.constant 29 : i32
    %145 = vector.broadcast %c29_i32 : i32 to vector<8x1xi32>
    %146 = arith.addi %145, %126 : vector<8x1xi32>
    %147 = vector.broadcast %146 : vector<8x1xi32> to vector<8x44xi32>
    %148 = arith.cmpi eq, %2, %147 : vector<8x44xi32>
    %149 = arith.extui %148 : vector<8x44xi1> to vector<8x44xi32>
    %150 = arith.sitofp %149 : vector<8x44xi32> to vector<8x44xf32>
    %151 = arith.addf %81, %150 : vector<8x44xf32>
    %c2_65 = arith.constant 2 : index
    %c0_66 = arith.constant 0 : index
    %c0_67 = arith.constant 0 : index
    %152 = vector.load %arg2[%c2_65, %c0_66, %c0_67] : memref<4x44x32xf32, #tpu.memory_space<vmem>>, vector<1x44x32xf32>
    %153 = vector.shape_cast %152 : vector<1x44x32xf32> to vector<44x32xf32>
    %cst_68 = arith.constant dense<0.000000e+00> : vector<8x32xf32>
    %154 = tpu.matmul %151, %153, %cst_68 {dimension_numbers = #tpu.dot_dimension_numbers<[1], [0], [0], [1], [0, 0, 1, 1], [], []>} : vector<8x44xf32>, vector<44x32xf32>, vector<8x32xf32> -> vector<8x32xf32>
    %c2_69 = arith.constant 2 : index
    %c0_70 = arith.constant 0 : index
    %c0_71 = arith.constant 0 : index
    %155 = vector.load %arg4[%c2_69, %c0_70, %c0_71] : memref<4x3x32xf32, #tpu.memory_space<vmem>>, vector<1x1x32xf32>
    %156 = vector.shape_cast %155 : vector<1x1x32xf32> to vector<1x32xf32>
    %157 = vector.broadcast %156 : vector<1x32xf32> to vector<8x32xf32>
    %158 = arith.addf %154, %157 : vector<8x32xf32>
    %cst_72 = arith.constant 0.000000e+00 : f32
    %159 = vector.broadcast %cst_72 : f32 to vector<8x32xf32>
    %160 = arith.maximumf %158, %159 : vector<8x32xf32>
    %c2_73 = arith.constant 2 : index
    %c0_74 = arith.constant 0 : index
    %c0_75 = arith.constant 0 : index
    %c0_76 = arith.constant 0 : index
    %161 = vector.load %arg3[%c2_73, %c0_74, %c0_75, %c0_76] : memref<4x2x32x32xf32, #tpu.memory_space<vmem>>, vector<1x1x32x32xf32>
    %162 = vector.shape_cast %161 : vector<1x1x32x32xf32> to vector<32x32xf32>
    %cst_77 = arith.constant dense<0.000000e+00> : vector<8x32xf32>
    %163 = tpu.matmul %160, %162, %cst_77 {dimension_numbers = #tpu.dot_dimension_numbers<[1], [0], [0], [1], [0, 0, 1, 1], [], []>} : vector<8x32xf32>, vector<32x32xf32>, vector<8x32xf32> -> vector<8x32xf32>
    %c2_78 = arith.constant 2 : index
    %c1_79 = arith.constant 1 : index
    %c0_80 = arith.constant 0 : index
    %164 = vector.load %arg4[%c2_78, %c1_79, %c0_80] : memref<4x3x32xf32, #tpu.memory_space<vmem>>, vector<1x1x32xf32>
    %165 = vector.shape_cast %164 : vector<1x1x32xf32> to vector<1x32xf32>
    %166 = vector.broadcast %165 : vector<1x32xf32> to vector<8x32xf32>
    %167 = arith.addf %163, %166 : vector<8x32xf32>
    %cst_81 = arith.constant 0.000000e+00 : f32
    %168 = vector.broadcast %cst_81 : f32 to vector<8x32xf32>
    %169 = arith.maximumf %167, %168 : vector<8x32xf32>
    %c2_82 = arith.constant 2 : index
    %c1_83 = arith.constant 1 : index
    %c0_84 = arith.constant 0 : index
    %c0_85 = arith.constant 0 : index
    %170 = vector.load %arg3[%c2_82, %c1_83, %c0_84, %c0_85] : memref<4x2x32x32xf32, #tpu.memory_space<vmem>>, vector<1x1x32x32xf32>
    %171 = vector.shape_cast %170 : vector<1x1x32x32xf32> to vector<32x32xf32>
    %cst_86 = arith.constant dense<0.000000e+00> : vector<8x32xf32>
    %172 = tpu.matmul %169, %171, %cst_86 {dimension_numbers = #tpu.dot_dimension_numbers<[1], [0], [0], [1], [0, 0, 1, 1], [], []>} : vector<8x32xf32>, vector<32x32xf32>, vector<8x32xf32> -> vector<8x32xf32>
    %c2_87 = arith.constant 2 : index
    %c2_88 = arith.constant 2 : index
    %c0_89 = arith.constant 0 : index
    %173 = vector.load %arg4[%c2_87, %c2_88, %c0_89] : memref<4x3x32xf32, #tpu.memory_space<vmem>>, vector<1x1x32xf32>
    %174 = vector.shape_cast %173 : vector<1x1x32xf32> to vector<1x32xf32>
    %175 = vector.broadcast %174 : vector<1x32xf32> to vector<8x32xf32>
    %176 = arith.addf %172, %175 : vector<8x32xf32>
    %177 = vector.extract_strided_slice %176 {offsets = [0, 0], sizes = [8, 5], strides = [1, 1]} : vector<8x32xf32> to vector<8x5xf32>
    %cst_90 = arith.constant dense<0xFF800000> : vector<8xf32>
    %178 = vector.multi_reduction <maximumf>, %177, %cst_90 [1] : vector<8x5xf32> to vector<8xf32>
    %179 = vector.shape_cast %178 : vector<8xf32> to vector<8x1xf32>
    %180 = vector.broadcast %179 : vector<8x1xf32> to vector<8x5xf32>
    %181 = arith.subf %177, %180 : vector<8x5xf32>
    %182 = math.exp %181 : vector<8x5xf32>
    %cst_91 = arith.constant dense<0.000000e+00> : vector<8xf32>
    %183 = vector.multi_reduction <add>, %182, %cst_91 [1] : vector<8x5xf32> to vector<8xf32>
    %184 = vector.shape_cast %183 : vector<8xf32> to vector<8x1xf32>
    %cst_92 = arith.constant dense<0.000000e+00> : vector<8x5xf32>
    %185 = tpu.matmul %182, %9, %cst_92 {dimension_numbers = #tpu.dot_dimension_numbers<[1], [0], [0], [1], [0, 0, 1, 1], [], []>} : vector<8x5xf32>, vector<5x5xf32>, vector<8x5xf32> -> vector<8x5xf32>
    %186 = vector.extract_strided_slice %1 {offsets = [0, 2], sizes = [8, 1], strides = [1, 1]} : vector<8x4xf32> to vector<8x1xf32>
    %187 = arith.mulf %186, %184 : vector<8x1xf32>
    %188 = vector.broadcast %187 : vector<8x1xf32> to vector<8x5xf32>
    %189 = arith.cmpf oge, %188, %185 : vector<8x5xf32>
    %190 = arith.extui %189 : vector<8x5xi1> to vector<8x5xi32>
    %191 = arith.sitofp %190 : vector<8x5xi32> to vector<8x5xf32>
    %cst_93 = arith.constant dense<0.000000e+00> : vector<8xf32>
    %192 = vector.multi_reduction <add>, %191, %cst_93 [1] : vector<8x5xf32> to vector<8xf32>
    %193 = vector.shape_cast %192 : vector<8xf32> to vector<8x1xf32>
    %194 = arith.fptosi %193 : vector<8x1xf32> to vector<8x1xi32>
    %c4_i32_94 = arith.constant 4 : i32
    %195 = vector.broadcast %c4_i32_94 : i32 to vector<8x1xi32>
    %196 = arith.minsi %194, %195 : vector<8x1xi32>
    %197 = vector.broadcast %196 : vector<8x1xi32> to vector<8x5xi32>
    %198 = arith.cmpi eq, %3, %197 : vector<8x5xi32>
    %199 = arith.extui %198 : vector<8x5xi1> to vector<8x5xi32>
    %200 = arith.sitofp %199 : vector<8x5xi32> to vector<8x5xf32>
    %201 = arith.mulf %200, %177 : vector<8x5xf32>
    %cst_95 = arith.constant dense<0.000000e+00> : vector<8xf32>
    %202 = vector.multi_reduction <add>, %201, %cst_95 [1] : vector<8x5xf32> to vector<8xf32>
    %203 = vector.shape_cast %202 : vector<8xf32> to vector<8x1xf32>
    %204 = math.log %184 : vector<8x1xf32>
    %205 = arith.addf %204, %179 : vector<8x1xf32>
    %206 = arith.subf %203, %205 : vector<8x1xf32>
    %207 = arith.addf %137, %206 : vector<8x1xf32>
    %c2_i32 = arith.constant 2 : i32
    %208 = vector.broadcast %c2_i32 : i32 to vector<8x4xi32>
    %209 = arith.cmpi eq, %4, %208 : vector<8x4xi32>
    %c0_i32_96 = arith.constant 0 : i32
    %210 = vector.shape_cast %196 : vector<8x1xi32> to vector<8x1xi32>
    %211 = vector.broadcast %210 : vector<8x1xi32> to vector<8x4xi32>
    %212 = vector.broadcast %c0_i32_96 : i32 to vector<8x4xi32>
    %213 = arith.select %209, %211, %212 : vector<8x4xi1>, vector<8x4xi32>
    %214 = arith.addi %144, %213 : vector<8x4xi32>
    %c34_i32 = arith.constant 34 : i32
    %215 = vector.broadcast %c34_i32 : i32 to vector<8x1xi32>
    %216 = arith.addi %215, %196 : vector<8x1xi32>
    %217 = vector.broadcast %216 : vector<8x1xi32> to vector<8x44xi32>
    %218 = arith.cmpi eq, %2, %217 : vector<8x44xi32>
    %219 = arith.extui %218 : vector<8x44xi1> to vector<8x44xi32>
    %220 = arith.sitofp %219 : vector<8x44xi32> to vector<8x44xf32>
    %221 = arith.addf %151, %220 : vector<8x44xf32>
    %c3 = arith.constant 3 : index
    %c0_97 = arith.constant 0 : index
    %c0_98 = arith.constant 0 : index
    %222 = vector.load %arg2[%c3, %c0_97, %c0_98] : memref<4x44x32xf32, #tpu.memory_space<vmem>>, vector<1x44x32xf32>
    %223 = vector.shape_cast %222 : vector<1x44x32xf32> to vector<44x32xf32>
    %cst_99 = arith.constant dense<0.000000e+00> : vector<8x32xf32>
    %224 = tpu.matmul %221, %223, %cst_99 {dimension_numbers = #tpu.dot_dimension_numbers<[1], [0], [0], [1], [0, 0, 1, 1], [], []>} : vector<8x44xf32>, vector<44x32xf32>, vector<8x32xf32> -> vector<8x32xf32>
    %c3_100 = arith.constant 3 : index
    %c0_101 = arith.constant 0 : index
    %c0_102 = arith.constant 0 : index
    %225 = vector.load %arg4[%c3_100, %c0_101, %c0_102] : memref<4x3x32xf32, #tpu.memory_space<vmem>>, vector<1x1x32xf32>
    %226 = vector.shape_cast %225 : vector<1x1x32xf32> to vector<1x32xf32>
    %227 = vector.broadcast %226 : vector<1x32xf32> to vector<8x32xf32>
    %228 = arith.addf %224, %227 : vector<8x32xf32>
    %cst_103 = arith.constant 0.000000e+00 : f32
    %229 = vector.broadcast %cst_103 : f32 to vector<8x32xf32>
    %230 = arith.maximumf %228, %229 : vector<8x32xf32>
    %c3_104 = arith.constant 3 : index
    %c0_105 = arith.constant 0 : index
    %c0_106 = arith.constant 0 : index
    %c0_107 = arith.constant 0 : index
    %231 = vector.load %arg3[%c3_104, %c0_105, %c0_106, %c0_107] : memref<4x2x32x32xf32, #tpu.memory_space<vmem>>, vector<1x1x32x32xf32>
    %232 = vector.shape_cast %231 : vector<1x1x32x32xf32> to vector<32x32xf32>
    %cst_108 = arith.constant dense<0.000000e+00> : vector<8x32xf32>
    %233 = tpu.matmul %230, %232, %cst_108 {dimension_numbers = #tpu.dot_dimension_numbers<[1], [0], [0], [1], [0, 0, 1, 1], [], []>} : vector<8x32xf32>, vector<32x32xf32>, vector<8x32xf32> -> vector<8x32xf32>
    %c3_109 = arith.constant 3 : index
    %c1_110 = arith.constant 1 : index
    %c0_111 = arith.constant 0 : index
    %234 = vector.load %arg4[%c3_109, %c1_110, %c0_111] : memref<4x3x32xf32, #tpu.memory_space<vmem>>, vector<1x1x32xf32>
    %235 = vector.shape_cast %234 : vector<1x1x32xf32> to vector<1x32xf32>
    %236 = vector.broadcast %235 : vector<1x32xf32> to vector<8x32xf32>
    %237 = arith.addf %233, %236 : vector<8x32xf32>
    %cst_112 = arith.constant 0.000000e+00 : f32
    %238 = vector.broadcast %cst_112 : f32 to vector<8x32xf32>
    %239 = arith.maximumf %237, %238 : vector<8x32xf32>
    %c3_113 = arith.constant 3 : index
    %c1_114 = arith.constant 1 : index
    %c0_115 = arith.constant 0 : index
    %c0_116 = arith.constant 0 : index
    %240 = vector.load %arg3[%c3_113, %c1_114, %c0_115, %c0_116] : memref<4x2x32x32xf32, #tpu.memory_space<vmem>>, vector<1x1x32x32xf32>
    %241 = vector.shape_cast %240 : vector<1x1x32x32xf32> to vector<32x32xf32>
    %cst_117 = arith.constant dense<0.000000e+00> : vector<8x32xf32>
    %242 = tpu.matmul %239, %241, %cst_117 {dimension_numbers = #tpu.dot_dimension_numbers<[1], [0], [0], [1], [0, 0, 1, 1], [], []>} : vector<8x32xf32>, vector<32x32xf32>, vector<8x32xf32> -> vector<8x32xf32>
    %c3_118 = arith.constant 3 : index
    %c2_119 = arith.constant 2 : index
    %c0_120 = arith.constant 0 : index
    %243 = vector.load %arg4[%c3_118, %c2_119, %c0_120] : memref<4x3x32xf32, #tpu.memory_space<vmem>>, vector<1x1x32xf32>
    %244 = vector.shape_cast %243 : vector<1x1x32xf32> to vector<1x32xf32>
    %245 = vector.broadcast %244 : vector<1x32xf32> to vector<8x32xf32>
    %246 = arith.addf %242, %245 : vector<8x32xf32>
    %247 = vector.extract_strided_slice %246 {offsets = [0, 0], sizes = [8, 5], strides = [1, 1]} : vector<8x32xf32> to vector<8x5xf32>
    %cst_121 = arith.constant dense<0xFF800000> : vector<8xf32>
    %248 = vector.multi_reduction <maximumf>, %247, %cst_121 [1] : vector<8x5xf32> to vector<8xf32>
    %249 = vector.shape_cast %248 : vector<8xf32> to vector<8x1xf32>
    %250 = vector.broadcast %249 : vector<8x1xf32> to vector<8x5xf32>
    %251 = arith.subf %247, %250 : vector<8x5xf32>
    %252 = math.exp %251 : vector<8x5xf32>
    %cst_122 = arith.constant dense<0.000000e+00> : vector<8xf32>
    %253 = vector.multi_reduction <add>, %252, %cst_122 [1] : vector<8x5xf32> to vector<8xf32>
    %254 = vector.shape_cast %253 : vector<8xf32> to vector<8x1xf32>
    %cst_123 = arith.constant dense<0.000000e+00> : vector<8x5xf32>
    %255 = tpu.matmul %252, %9, %cst_123 {dimension_numbers = #tpu.dot_dimension_numbers<[1], [0], [0], [1], [0, 0, 1, 1], [], []>} : vector<8x5xf32>, vector<5x5xf32>, vector<8x5xf32> -> vector<8x5xf32>
    %256 = vector.extract_strided_slice %1 {offsets = [0, 3], sizes = [8, 1], strides = [1, 1]} : vector<8x4xf32> to vector<8x1xf32>
    %257 = arith.mulf %256, %254 : vector<8x1xf32>
    %258 = vector.broadcast %257 : vector<8x1xf32> to vector<8x5xf32>
    %259 = arith.cmpf oge, %258, %255 : vector<8x5xf32>
    %260 = arith.extui %259 : vector<8x5xi1> to vector<8x5xi32>
    %261 = arith.sitofp %260 : vector<8x5xi32> to vector<8x5xf32>
    %cst_124 = arith.constant dense<0.000000e+00> : vector<8xf32>
    %262 = vector.multi_reduction <add>, %261, %cst_124 [1] : vector<8x5xf32> to vector<8xf32>
    %263 = vector.shape_cast %262 : vector<8xf32> to vector<8x1xf32>
    %264 = arith.fptosi %263 : vector<8x1xf32> to vector<8x1xi32>
    %c4_i32_125 = arith.constant 4 : i32
    %265 = vector.broadcast %c4_i32_125 : i32 to vector<8x1xi32>
    %266 = arith.minsi %264, %265 : vector<8x1xi32>
    %267 = vector.broadcast %266 : vector<8x1xi32> to vector<8x5xi32>
    %268 = arith.cmpi eq, %3, %267 : vector<8x5xi32>
    %269 = arith.extui %268 : vector<8x5xi1> to vector<8x5xi32>
    %270 = arith.sitofp %269 : vector<8x5xi32> to vector<8x5xf32>
    %271 = arith.mulf %270, %247 : vector<8x5xf32>
    %cst_126 = arith.constant dense<0.000000e+00> : vector<8xf32>
    %272 = vector.multi_reduction <add>, %271, %cst_126 [1] : vector<8x5xf32> to vector<8xf32>
    %273 = vector.shape_cast %272 : vector<8xf32> to vector<8x1xf32>
    %274 = math.log %254 : vector<8x1xf32>
    %275 = arith.addf %274, %249 : vector<8x1xf32>
    %276 = arith.subf %273, %275 : vector<8x1xf32>
    %277 = arith.addf %207, %276 : vector<8x1xf32>
    %c3_i32 = arith.constant 3 : i32
    %278 = vector.broadcast %c3_i32 : i32 to vector<8x4xi32>
    %279 = arith.cmpi eq, %4, %278 : vector<8x4xi32>
    %c0_i32_127 = arith.constant 0 : i32
    %280 = vector.shape_cast %266 : vector<8x1xi32> to vector<8x1xi32>
    %281 = vector.broadcast %280 : vector<8x1xi32> to vector<8x4xi32>
    %282 = vector.broadcast %c0_i32_127 : i32 to vector<8x4xi32>
    %283 = arith.select %279, %281, %282 : vector<8x4xi1>, vector<8x4xi32>
    %284 = arith.addi %214, %283 : vector<8x4xi32>
    %c0_128 = arith.constant 0 : index
    %c0_129 = arith.constant 0 : index
    %285 = vector.load %arg5[%c0_128, %c0_129] : memref<8x4xi32, #tpu.memory_space<vmem>>, vector<8x4xi32>
    tpu.vector_store %arg5[%c0_128, %c0_129], %284 {strides = array<i32>} : memref<8x4xi32, #tpu.memory_space<vmem>>, vector<8x4xi32>,
    %c0_130 = arith.constant 0 : index
    %c0_131 = arith.constant 0 : index
    %286 = vector.load %arg6[%c0_130, %c0_131] : memref<8x1xf32, #tpu.memory_space<vmem>>, vector<8x1xf32>
    tpu.vector_store %arg6[%c0_130, %c0_131], %277 {strides = array<i32>} : memref<8x1xf32, #tpu.memory_space<vmem>>, vector<8x1xf32>,
    return
  }
}

</mosaic_0001>

<llo_original>
// kernel: actor_forward.1
$region0: #{actor_forward.1}
  #allocation0 [shape = 'u32[]', space=smem, size = 0x4, offset = 0x4, fixed_abs, tag = 'smem constant byte address 0x4 - core index']
  #allocation1 [shape = 'u32[72,128]{1,0:T(1,128)}', space=vmem, size = 0x9000, scoped, tag = 'internal scratch']
  %s0 = inlined_call_operand.vmem [shape: f32[8,44], index: 0, kind: input, shape index: {}]
  %s1 = inlined_call_operand.vmem [shape: f32[8,4], index: 1, kind: input, shape index: {}]
  %s2 = inlined_call_operand.vmem [shape: f32[4,44,32], index: 2, kind: input, shape index: {}]
  %s3 = inlined_call_operand.vmem [shape: f32[4,2,32,32], index: 3, kind: input, shape index: {}]
  %s4 = inlined_call_operand.vmem [shape: f32[4,3,32], index: 4, kind: input, shape index: {}]
  %s5 = inlined_call_operand.vmem [shape: s32[8,4], index: 5, kind: output, shape index: {0}]
  %s6 = inlined_call_operand.vmem [shape: f32[8,1], index: 6, kind: output, shape index: {1}]
  %7 = xla_tuple %s5, %s6
  %s8 = sld [smem:[#allocation0]]
  $region38: #{actor_forward.1} parent=0
    _
  %s10 = ssub.s32 1, %s8
  %s11 = scalar_select 0, %s10, %s8
  // Predicated region
  $region2: #{actor_forward.1} parent=0 // pred_check
    _
  $region3: #{actor_forward.1} parent=0 // pred_check_branch
    %13 = sbr.rel (0) target = $region5
  $region4: #{actor_forward.1} parent=0 // pred_region
    _
  $region5: #{actor_forward.1} parent=0 // pred_fallthru
    _
  // Predicated region
  $region6: #{actor_forward.1} parent=0 // pred_check
    _
  $region7: #{actor_forward.1} parent=0 // pred_check_branch
    %15 = sbr.rel (0) target = $region9
  $region8: #{actor_forward.1} parent=0 // pred_region
    _
  $region9: #{actor_forward.1} parent=0 // pred_fallthru
    _
  // Predicated region
  $region10: #{actor_forward.1} parent=0 // pred_check
    _
  $region11: #{actor_forward.1} parent=0 // pred_check_branch
    %17 = sbr.rel (0) target = $region13
  $region12: #{actor_forward.1} parent=0 // pred_region
    _
  $region13: #{actor_forward.1} parent=0 // pred_fallthru
    _
  // Predicated region
  $region14: #{actor_forward.1} parent=0 // pred_check
    _
  $region15: #{actor_forward.1} parent=0 // pred_check_branch
    %19 = sbr.rel (0) target = $region17
  $region16: #{actor_forward.1} parent=0 // pred_region
    _
  $region17: #{actor_forward.1} parent=0 // pred_fallthru
    _
  // Predicated region
  $region18: #{actor_forward.1} parent=0 // pred_check
    _
  $region19: #{actor_forward.1} parent=0 // pred_check_branch
    %21 = sbr.rel (0) target = $region21
  $region20: #{actor_forward.1} parent=0 // pred_region
    _
  $region21: #{actor_forward.1} parent=0 // pred_fallthru
    _
  %v22 = vld [vmem:[%s0] sm:$0xff]
  %v23 = vld [vmem:[%s1] sm:$0xff]
  %v24 = vlaneseq
  %v25 = vand.u32 %v24, 127
  %v26 = vlaneseq
  %v27 = vshrl.u32 %v26, 7
  %vm28 = vcmp.le.s32.totalorder %v27, %v25
  %v29 = vsel %vm28, 1, 0
  %v30 = vcvt.s32.f32 %v29
  %v31 = vld [vmem:[%s2] sm:$0xff]
  %v32 = vld [vmem:[%s2 + $0x8] sm:$0xff]
  %v33 = vld [vmem:[%s2 + $0x10] sm:$0xff]
  %v34 = vld [vmem:[%s2 + $0x18] sm:$0xff]
  %v35 = vld [vmem:[%s2 + $0x20] sm:$0xff]
  %v36 = vld [vmem:[%s2 + $0x28] sm:$0xf]
  %v37 = vld [vmem:[%s4] sm:$0x1]
  %v38 = vperm.slane %v37, 0
  %vm39 = vcmask 359424
  %v41 = vsel %vm39, %v22, 0
  %vm43 = vcmask 1043456
  %v45 = vsel %vm43, %v36, 0
  %47 = vmatpush.msra.mxu0 0.0
  %48 = vmatpush.msra.mxu0 0.0
  %49 = vmatpush.msra.mxu0 0.0
  %50 = vmatpush.msra.mxu0 0.0
  %51 = vmatpush.msra.mxu0 0.0
  %52 = vmatpush.msra.mxu0 0.0
  %53 = vmatpush.msra.mxu0 0.0
  %54 = vmatpush.msra.mxu0 0.0
  %55 = vmatpush.msra.mxu0 0.0
  %56 = vmatpush.msra.mxu0 0.0
  %57 = vmatpush.msra.mxu0 %v45
  %58 = vmatpush.msra.mxu0 %v35
  %59 = vmatpush.msra.mxu0 %v34
  %60 = vmatpush.msra.mxu0 %v33
  %61 = vmatpush.msra.mxu0 %v32
  %62 = vmatpush.msra.mxu0 %v31
  %63 = vmatmul.f32.gmra.mxu0 %v41
  %v64 = vpop.f32.mrf.mxu0
  %v65 = vadd.f32 %v38, %v64
  %66 = vdwg.mxu0
  %v67 = vmax.f32 %v65, 0.0
  %v68 = vld [vmem:[%s3] sm:$0xff]
  %v69 = vld [vmem:[%s3 + $0x8] sm:$0xff]
  %v70 = vld [vmem:[%s3 + $0x10] sm:$0xff]
  %v71 = vld [vmem:[%s3 + $0x18] sm:$0xff]
  %v72 = vld [vmem:[%s4 + $0x1] sm:$0x1]
  %v73 = vperm.slane %v72, 0
  %vm74 = vcmask 261120
  %v76 = vsel %vm74, %v67, 0
  %78 = vmatpush.msra.mxu0 0.0
  %79 = vmatpush.msra.mxu0 0.0
  %80 = vmatpush.msra.mxu0 0.0
  %81 = vmatpush.msra.mxu0 0.0
  %82 = vmatpush.msra.mxu0 0.0
  %83 = vmatpush.msra.mxu0 0.0
  %84 = vmatpush.msra.mxu0 0.0
  %85 = vmatpush.msra.mxu0 0.0
  %86 = vmatpush.msra.mxu0 0.0
  %87 = vmatpush.msra.mxu0 0.0
  %88 = vmatpush.msra.mxu0 0.0
  %89 = vmatpush.msra.mxu0 0.0
  %90 = vmatpush.msra.mxu0 %v71
  %91 = vmatpush.msra.mxu0 %v70
  %92 = vmatpush.msra.mxu0 %v69
  %93 = vmatpush.msra.mxu0 %v68
  %94 = vmatmul.f32.gmra.mxu0 %v76
  %v95 = vpop.f32.mrf.mxu0
  %v96 = vadd.f32 %v73, %v95
  %97 = vdwg.mxu0
  %v98 = vmax.f32 %v96, 0.0
  %s99 = scalar_lea.vmem %s3, 32
  %v100 = vld [vmem:[%s99] sm:$0xff]
  %v101 = vld [vmem:[%s99 + $0x8] sm:$0xff]
  %v102 = vld [vmem:[%s99 + $0x10] sm:$0xff]
  %v103 = vld [vmem:[%s99 + $0x18] sm:$0xff]
  %v104 = vld [vmem:[%s4 + $0x2] sm:$0x1]
  %v105 = vperm.slane %v104, 0
  %v107 = vsel %vm74, %v98, 0
  %109 = vmatpush.msra.mxu0 0.0
  %110 = vmatpush.msra.mxu0 0.0
  %111 = vmatpush.msra.mxu0 0.0
  %112 = vmatpush.msra.mxu0 0.0
  %113 = vmatpush.msra.mxu0 0.0
  %114 = vmatpush.msra.mxu0 0.0
  %115 = vmatpush.msra.mxu0 0.0
  %116 = vmatpush.msra.mxu0 0.0
  %117 = vmatpush.msra.mxu0 0.0
  %118 = vmatpush.msra.mxu0 0.0
  %119 = vmatpush.msra.mxu0 0.0
  %120 = vmatpush.msra.mxu0 0.0
  %121 = vmatpush.msra.mxu0 %v103
  %122 = vmatpush.msra.mxu0 %v102
  %123 = vmatpush.msra.mxu0 %v101
  %124 = vmatpush.msra.mxu0 %v100
  %125 = vmatmul.f32.gmra.mxu0 %v107
  %v126 = vpop.f32.mrf.mxu0
  %v127 = vadd.f32 %v105, %v126
  %128 = vdwg.mxu0
  %vm129 = vcmask 39936
  %v130 = vsel %vm129, %v127, -inf
  %131 = vmax.xlane.f32.xlu0 %v130
  %v132 = vpop.xlane.xlu0 %131
  %v133 = vsub.f32 %v127, %v132
  %v134 = vmul.f32 %v133, 1.442695
  %v135 = vpow.pop %v134
  %v136 = vsel %vm129, %v135, 0.0
  %137 = vadd.xlane.f32.xlu0 %v136
  %v138 = vpop.xlane.xlu0 %137
  %v140 = vsel %vm129, %v135, 0
  %vm142 = vcmask 1044480
  %v144 = vsel %vm142, %v30, 0
  %146 = vmatpush.msra.mxu0 0.0
  %147 = vmatpush.msra.mxu0 0.0
  %148 = vmatpush.msra.mxu0 0.0
  %149 = vmatpush.msra.mxu0 0.0
  %150 = vmatpush.msra.mxu0 0.0
  %151 = vmatpush.msra.mxu0 0.0
  %152 = vmatpush.msra.mxu0 0.0
  %153 = vmatpush.msra.mxu0 0.0
  %154 = vmatpush.msra.mxu0 0.0
  %155 = vmatpush.msra.mxu0 0.0
  %156 = vmatpush.msra.mxu0 0.0
  %157 = vmatpush.msra.mxu0 0.0
  %158 = vmatpush.msra.mxu0 0.0
  %159 = vmatpush.msra.mxu0 0.0
  %160 = vmatpush.msra.mxu0 0.0
  %161 = vmatpush.msra.mxu0 %v144
  %162 = vmatmul.f32.gmra.mxu0 %v140
  %v163 = vpop.f32.mrf.mxu0
  %v164 = vadd.f32 0.0, %v163
  %165 = vdwg.mxu0
  %v166 = vmul.f32 %v23, %v138
  %168 = vset.pattern.permute.xlu0 0
  %169 = vperm.xlu0 %168, %v166
  %v170 = vpop.permute.xlu0 %169
  %vm172 = vcmp.ge.f32.partialorder %v170, %v164
  %v173 = vsel %vm172, 1, 0
  %v174 = vcvt.s32.f32 %v173
  %v175 = vsel %vm129, %v174, 0.0
  %176 = vadd.xlane.f32.xlu0 %v175
  %v177 = vpop.xlane.xlu0 %176
  %v178 = vcvt.f32.s32.to.zero.pseudo %v177
  %vm179 = vcmp.lt.s32.totalorder %v178, 4
  %v180 = vsel %vm179, %v178, 4
  %vm181 = vcmp.eq.s32.totalorder %v25, %v180
  %v182 = vsel %vm181, 1, 0
  %v183 = vcvt.s32.f32 %v182
  %v184 = vmul.f32 %v183, %v127
  %v185 = vsel %vm129, %v184, 0.0
  %186 = vadd.xlane.f32.xlu0 %v185
  %v187 = vpop.xlane.xlu0 %186
  %v188 = vlog2.pop %v138
  %v189 = vmul.f32 %v188, 0.6931472
  %v190 = vadd.f32 %v189, %v132
  %v191 = vsub.f32 %v187, %v190
  %v192 = vadd.f32 %v191, 0.0
  %vm193 = vcmp.eq.s32.totalorder %v25, 0
  %v194 = vsel %vm193, %v180, 0
  %v195 = vadd.s32 %v180, 24
  %vm196 = vcmp.eq.s32.totalorder %v25, %v195
  %v197 = vsel %vm196, 1, 0
  %v198 = vcvt.s32.f32 %v197
  %v199 = vadd.f32 %v22, %v198
  %s200 = scalar_lea.vmem %s2, 48
  %v201 = vld [vmem:[%s200] sm:$0xff]
  %v202 = vld [vmem:[%s200 + $0x8] sm:$0xff]
  %v203 = vld [vmem:[%s200 + $0x10] sm:$0xff]
  %v204 = vld [vmem:[%s200 + $0x18] sm:$0xff]
  %v205 = vld [vmem:[%s200 + $0x20] sm:$0xff]
  %v206 = vld [vmem:[%s200 + $0x28] sm:$0xf]
  %s207 = scalar_lea.vmem %s4, 4
  %v208 = vld [vmem:[%s207] sm:$0x1]
  %v209 = vperm.slane %v208, 0
  %v211 = vsel %vm39, %v199, 0
  %v214 = vsel %vm43, %v206, 0
  %216 = vmatpush.msra.mxu0 0.0
  %217 = vmatpush.msra.mxu0 0.0
  %218 = vmatpush.msra.mxu0 0.0
  %219 = vmatpush.msra.mxu0 0.0
  %220 = vmatpush.msra.mxu0 0.0
  %221 = vmatpush.msra.mxu0 0.0
  %222 = vmatpush.msra.mxu0 0.0
  %223 = vmatpush.msra.mxu0 0.0
  %224 = vmatpush.msra.mxu0 0.0
  %225 = vmatpush.msra.mxu0 0.0
  %226 = vmatpush.msra.mxu0 %v214
  %227 = vmatpush.msra.mxu0 %v205
  %228 = vmatpush.msra.mxu0 %v204
  %229 = vmatpush.msra.mxu0 %v203
  %230 = vmatpush.msra.mxu0 %v202
  %231 = vmatpush.msra.mxu0 %v201
  %232 = vmatmul.f32.gmra.mxu0 %v211
  %v233 = vpop.f32.mrf.mxu0
  %v234 = vadd.f32 %v209, %v233
  %235 = vdwg.mxu0
  %v236 = vmax.f32 %v234, 0.0
  %s237 = scalar_lea.vmem %s3, 64
  %v238 = vld [vmem:[%s237] sm:$0xff]
  %v239 = vld [vmem:[%s237 + $0x8] sm:$0xff]
  %v240 = vld [vmem:[%s237 + $0x10] sm:$0xff]
  %v241 = vld [vmem:[%s237 + $0x18] sm:$0xff]
  %v242 = vld [vmem:[%s207 + $0x1] sm:$0x1]
  %v243 = vperm.slane %v242, 0
  %v245 = vsel %vm74, %v236, 0
  %247 = vmatpush.msra.mxu0 0.0
  %248 = vmatpush.msra.mxu0 0.0
  %249 = vmatpush.msra.mxu0 0.0
  %250 = vmatpush.msra.mxu0 0.0
  %251 = vmatpush.msra.mxu0 0.0
  %252 = vmatpush.msra.mxu0 0.0
  %253 = vmatpush.msra.mxu0 0.0
  %254 = vmatpush.msra.mxu0 0.0
  %255 = vmatpush.msra.mxu0 0.0
  %256 = vmatpush.msra.mxu0 0.0
  %257 = vmatpush.msra.mxu0 0.0
  %258 = vmatpush.msra.mxu0 0.0
  %259 = vmatpush.msra.mxu0 %v241
  %260 = vmatpush.msra.mxu0 %v240
  %261 = vmatpush.msra.mxu0 %v239
  %262 = vmatpush.msra.mxu0 %v238
  %263 = vmatmul.f32.gmra.mxu0 %v245
  %v264 = vpop.f32.mrf.mxu0
  %v265 = vadd.f32 %v243, %v264
  %266 = vdwg.mxu0
  %v267 = vmax.f32 %v265, 0.0
  %s268 = scalar_lea.vmem %s3, 96
  %v269 = vld [vmem:[%s268] sm:$0xff]
  %v270 = vld [vmem:[%s268 + $0x8] sm:$0xff]
  %v271 = vld [vmem:[%s268 + $0x10] sm:$0xff]
  %v272 = vld [vmem:[%s268 + $0x18] sm:$0xff]
  %v273 = vld [vmem:[%s207 + $0x2] sm:$0x1]
  %v274 = vperm.slane %v273, 0
  %v276 = vsel %vm74, %v267, 0
  %278 = vmatpush.msra.mxu0 0.0
  %279 = vmatpush.msra.mxu0 0.0
  %280 = vmatpush.msra.mxu0 0.0
  %281 = vmatpush.msra.mxu0 0.0
  %282 = vmatpush.msra.mxu0 0.0
  %283 = vmatpush.msra.mxu0 0.0
  %284 = vmatpush.msra.mxu0 0.0
  %285 = vmatpush.msra.mxu0 0.0
  %286 = vmatpush.msra.mxu0 0.0
  %287 = vmatpush.msra.mxu0 0.0
  %288 = vmatpush.msra.mxu0 0.0
  %289 = vmatpush.msra.mxu0 0.0
  %290 = vmatpush.msra.mxu0 %v272
  %291 = vmatpush.msra.mxu0 %v271
  %292 = vmatpush.msra.mxu0 %v270
  %293 = vmatpush.msra.mxu0 %v269
  %294 = vmatmul.f32.gmra.mxu0 %v276
  %v295 = vpop.f32.mrf.mxu0
  %v296 = vadd.f32 %v274, %v295
  %297 = vdwg.mxu0
  %v298 = vsel %vm129, %v296, -inf
  %299 = vmax.xlane.f32.xlu0 %v298
  %v300 = vpop.xlane.xlu0 %299
  %v301 = vsub.f32 %v296, %v300
  %v302 = vmul.f32 %v301, 1.442695
  %v303 = vpow.pop %v302
  %v304 = vsel %vm129, %v303, 0.0
  %305 = vadd.xlane.f32.xlu0 %v304
  %v306 = vpop.xlane.xlu0 %305
  %v308 = vsel %vm129, %v303, 0
  %310 = vmatpush.msra.mxu0 0.0
  %311 = vmatpush.msra.mxu0 0.0
  %312 = vmatpush.msra.mxu0 0.0
  %313 = vmatpush.msra.mxu0 0.0
  %314 = vmatpush.msra.mxu0 0.0
  %315 = vmatpush.msra.mxu0 0.0
  %316 = vmatpush.msra.mxu0 0.0
  %317 = vmatpush.msra.mxu0 0.0
  %318 = vmatpush.msra.mxu0 0.0
  %319 = vmatpush.msra.mxu0 0.0
  %320 = vmatpush.msra.mxu0 0.0
  %321 = vmatpush.msra.mxu0 0.0
  %322 = vmatpush.msra.mxu0 0.0
  %323 = vmatpush.msra.mxu0 0.0
  %324 = vmatpush.msra.mxu0 0.0
  %325 = vmatpush.msra.mxu0 %v144
  %326 = vmatmul.f32.gmra.mxu0 %v308
  %v327 = vpop.f32.mrf.mxu0
  %v328 = vadd.f32 0.0, %v327
  %329 = vdwg.mxu0
  %v330 = vmul.f32 %v23, %v306
  %332 = vset.pattern.permute.xlu0 1
  %333 = vperm.xlu0 %332, %v330
  %v334 = vpop.permute.xlu0 %333
  %vm336 = vcmp.ge.f32.partialorder %v334, %v328
  %v337 = vsel %vm336, 1, 0
  %v338 = vcvt.s32.f32 %v337
  %v339 = vsel %vm129, %v338, 0.0
  %340 = vadd.xlane.f32.xlu0 %v339
  %v341 = vpop.xlane.xlu0 %340
  %v342 = vcvt.f32.s32.to.zero.pseudo %v341
  %vm343 = vcmp.lt.s32.totalorder %v342, 4
  %v344 = vsel %vm343, %v342, 4
  %vm345 = vcmp.eq.s32.totalorder %v25, %v344
  %v346 = vsel %vm345, 1, 0
  %v347 = vcvt.s32.f32 %v346
  %v348 = vmul.f32 %v347, %v296
  %v349 = vsel %vm129, %v348, 0.0
  %350 = vadd.xlane.f32.xlu0 %v349
  %v351 = vpop.xlane.xlu0 %350
  %v352 = vlog2.pop %v306
  %v353 = vmul.f32 %v352, 0.6931472
  %v354 = vadd.f32 %v353, %v300
  %v355 = vsub.f32 %v351, %v354
  %v356 = vadd.f32 %v192, %v355
  %vm357 = vcmp.eq.s32.totalorder %v25, 1
  %v358 = vsel %vm357, %v344, 0
  %v359 = vadd.s32 %v194, %v358
  %v360 = vadd.s32 %v344, 29
  %vm361 = vcmp.eq.s32.totalorder %v25, %v360
  %v362 = vsel %vm361, 1, 0
  %v363 = vcvt.s32.f32 %v362
  %v364 = vadd.f32 %v199, %v363
  %s365 = scalar_lea.vmem %s2, 96
  %v366 = vld [vmem:[%s365] sm:$0xff]
  %v367 = vld [vmem:[%s365 + $0x8] sm:$0xff]
  %v368 = vld [vmem:[%s365 + $0x10] sm:$0xff]
  %v369 = vld [vmem:[%s365 + $0x18] sm:$0xff]
  %v370 = vld [vmem:[%s365 + $0x20] sm:$0xff]
  %v371 = vld [vmem:[%s365 + $0x28] sm:$0xf]
  %s372 = scalar_lea.vmem %s4, 8
  %v373 = vld [vmem:[%s372] sm:$0x1]
  %v374 = vperm.slane %v373, 0
  %v376 = vsel %vm39, %v364, 0
  %v379 = vsel %vm43, %v371, 0
  %381 = vmatpush.msra.mxu0 0.0
  %382 = vmatpush.msra.mxu0 0.0
  %383 = vmatpush.msra.mxu0 0.0
  %384 = vmatpush.msra.mxu0 0.0
  %385 = vmatpush.msra.mxu0 0.0
  %386 = vmatpush.msra.mxu0 0.0
  %387 = vmatpush.msra.mxu0 0.0
  %388 = vmatpush.msra.mxu0 0.0
  %389 = vmatpush.msra.mxu0 0.0
  %390 = vmatpush.msra.mxu0 0.0
  %391 = vmatpush.msra.mxu0 %v379
  %392 = vmatpush.msra.mxu0 %v370
  %393 = vmatpush.msra.mxu0 %v369
  %394 = vmatpush.msra.mxu0 %v368
  %395 = vmatpush.msra.mxu0 %v367
  %396 = vmatpush.msra.mxu0 %v366
  %397 = vmatmul.f32.gmra.mxu0 %v376
  %v398 = vpop.f32.mrf.mxu0
  %v399 = vadd.f32 %v374, %v398
  %400 = vdwg.mxu0
  %v401 = vmax.f32 %v399, 0.0
  %s402 = scalar_lea.vmem %s3, 128
  %v403 = vld [vmem:[%s402] sm:$0xff]
  %v404 = vld [vmem:[%s402 + $0x8] sm:$0xff]
  %v405 = vld [vmem:[%s402 + $0x10] sm:$0xff]
  %v406 = vld [vmem:[%s402 + $0x18] sm:$0xff]
  %v407 = vld [vmem:[%s372 + $0x1] sm:$0x1]
  %v408 = vperm.slane %v407, 0
  %v410 = vsel %vm74, %v401, 0
  %412 = vmatpush.msra.mxu0 0.0
  %413 = vmatpush.msra.mxu0 0.0
  %414 = vmatpush.msra.mxu0 0.0
  %415 = vmatpush.msra.mxu0 0.0
  %416 = vmatpush.msra.mxu0 0.0
  %417 = vmatpush.msra.mxu0 0.0
  %418 = vmatpush.msra.mxu0 0.0
  %419 = vmatpush.msra.mxu0 0.0
  %420 = vmatpush.msra.mxu0 0.0
  %421 = vmatpush.msra.mxu0 0.0
  %422 = vmatpush.msra.mxu0 0.0
  %423 = vmatpush.msra.mxu0 0.0
  %424 = vmatpush.msra.mxu0 %v406
  %425 = vmatpush.msra.mxu0 %v405
  %426 = vmatpush.msra.mxu0 %v404
  %427 = vmatpush.msra.mxu0 %v403
  %428 = vmatmul.f32.gmra.mxu0 %v410
  %v429 = vpop.f32.mrf.mxu0
  %v430 = vadd.f32 %v408, %v429
  %431 = vdwg.mxu0
  %v432 = vmax.f32 %v430, 0.0
  %s433 = scalar_lea.vmem %s3, 160
  %v434 = vld [vmem:[%s433] sm:$0xff]
  %v435 = vld [vmem:[%s433 + $0x8] sm:$0xff]
  %v436 = vld [vmem:[%s433 + $0x10] sm:$0xff]
  %v437 = vld [vmem:[%s433 + $0x18] sm:$0xff]
  %v438 = vld [vmem:[%s372 + $0x2] sm:$0x1]
  %v439 = vperm.slane %v438, 0
  %v441 = vsel %vm74, %v432, 0
  %443 = vmatpush.msra.mxu0 0.0
  %444 = vmatpush.msra.mxu0 0.0
  %445 = vmatpush.msra.mxu0 0.0
  %446 = vmatpush.msra.mxu0 0.0
  %447 = vmatpush.msra.mxu0 0.0
  %448 = vmatpush.msra.mxu0 0.0
  %449 = vmatpush.msra.mxu0 0.0
  %450 = vmatpush.msra.mxu0 0.0
  %451 = vmatpush.msra.mxu0 0.0
  %452 = vmatpush.msra.mxu0 0.0
  %453 = vmatpush.msra.mxu0 0.0
  %454 = vmatpush.msra.mxu0 0.0
  %455 = vmatpush.msra.mxu0 %v437
  %456 = vmatpush.msra.mxu0 %v436
  %457 = vmatpush.msra.mxu0 %v435
  %458 = vmatpush.msra.mxu0 %v434
  %459 = vmatmul.f32.gmra.mxu0 %v441
  %v460 = vpop.f32.mrf.mxu0
  %v461 = vadd.f32 %v439, %v460
  %462 = vdwg.mxu0
  %v463 = vsel %vm129, %v461, -inf
  %464 = vmax.xlane.f32.xlu0 %v463
  %v465 = vpop.xlane.xlu0 %464
  %v466 = vsub.f32 %v461, %v465
  %v467 = vmul.f32 %v466, 1.442695
  %v468 = vpow.pop %v467
  %v469 = vsel %vm129, %v468, 0.0
  %470 = vadd.xlane.f32.xlu0 %v469
  %v471 = vpop.xlane.xlu0 %470
  %v473 = vsel %vm129, %v468, 0
  %475 = vmatpush.msra.mxu0 0.0
  %476 = vmatpush.msra.mxu0 0.0
  %477 = vmatpush.msra.mxu0 0.0
  %478 = vmatpush.msra.mxu0 0.0
  %479 = vmatpush.msra.mxu0 0.0
  %480 = vmatpush.msra.mxu0 0.0
  %481 = vmatpush.msra.mxu0 0.0
  %482 = vmatpush.msra.mxu0 0.0
  %483 = vmatpush.msra.mxu0 0.0
  %484 = vmatpush.msra.mxu0 0.0
  %485 = vmatpush.msra.mxu0 0.0
  %486 = vmatpush.msra.mxu0 0.0
  %487 = vmatpush.msra.mxu0 0.0
  %488 = vmatpush.msra.mxu0 0.0
  %489 = vmatpush.msra.mxu0 0.0
  %490 = vmatpush.msra.mxu0 %v144
  %491 = vmatmul.f32.gmra.mxu0 %v473
  %v492 = vpop.f32.mrf.mxu0
  %v493 = vadd.f32 0.0, %v492
  %494 = vdwg.mxu0
  %v495 = vmul.f32 %v23, %v471
  %497 = vset.pattern.permute.xlu0 2
  %498 = vperm.xlu0 %497, %v495
  %v499 = vpop.permute.xlu0 %498
  %vm501 = vcmp.ge.f32.partialorder %v499, %v493
  %v502 = vsel %vm501, 1, 0
  %v503 = vcvt.s32.f32 %v502
  %v504 = vsel %vm129, %v503, 0.0
  %505 = vadd.xlane.f32.xlu0 %v504
  %v506 = vpop.xlane.xlu0 %505
  %v507 = vcvt.f32.s32.to.zero.pseudo %v506
  %vm508 = vcmp.lt.s32.totalorder %v507, 4
  %v509 = vsel %vm508, %v507, 4
  %vm510 = vcmp.eq.s32.totalorder %v25, %v509
  %v511 = vsel %vm510, 1, 0
  %v512 = vcvt.s32.f32 %v511
  %v513 = vmul.f32 %v512, %v461
  %v514 = vsel %vm129, %v513, 0.0
  %515 = vadd.xlane.f32.xlu0 %v514
  %v516 = vpop.xlane.xlu0 %515
  %v517 = vlog2.pop %v471
  %v518 = vmul.f32 %v517, 0.6931472
  %v519 = vadd.f32 %v518, %v465
  %v520 = vsub.f32 %v516, %v519
  %v521 = vadd.f32 %v356, %v520
  %vm522 = vcmp.eq.s32.totalorder %v25, 2
  %v523 = vsel %vm522, %v509, 0
  %v524 = vadd.s32 %v359, %v523
  %v525 = vadd.s32 %v509, 34
  %vm526 = vcmp.eq.s32.totalorder %v25, %v525
  %v527 = vsel %vm526, 1, 0
  %v528 = vcvt.s32.f32 %v527
  %v529 = vadd.f32 %v364, %v528
  %s530 = scalar_lea.vmem %s2, 144
  %v531 = vld [vmem:[%s530] sm:$0xff]
  %v532 = vld [vmem:[%s530 + $0x8] sm:$0xff]
  %v533 = vld [vmem:[%s530 + $0x10] sm:$0xff]
  %v534 = vld [vmem:[%s530 + $0x18] sm:$0xff]
  %v535 = vld [vmem:[%s530 + $0x20] sm:$0xff]
  %v536 = vld [vmem:[%s530 + $0x28] sm:$0xf]
  %s537 = scalar_lea.vmem %s4, 12
  %v538 = vld [vmem:[%s537] sm:$0x1]
  %v539 = vperm.slane %v538, 0
  %v541 = vsel %vm39, %v529, 0
  %v544 = vsel %vm43, %v536, 0
  %546 = vmatpush.msra.mxu0 0.0
  %547 = vmatpush.msra.mxu0 0.0
  %548 = vmatpush.msra.mxu0 0.0
  %549 = vmatpush.msra.mxu0 0.0
  %550 = vmatpush.msra.mxu0 0.0
  %551 = vmatpush.msra.mxu0 0.0
  %552 = vmatpush.msra.mxu0 0.0
  %553 = vmatpush.msra.mxu0 0.0
  %554 = vmatpush.msra.mxu0 0.0
  %555 = vmatpush.msra.mxu0 0.0
  %556 = vmatpush.msra.mxu0 %v544
  %557 = vmatpush.msra.mxu0 %v535
  %558 = vmatpush.msra.mxu0 %v534
  %559 = vmatpush.msra.mxu0 %v533
  %560 = vmatpush.msra.mxu0 %v532
  %561 = vmatpush.msra.mxu0 %v531
  %562 = vmatmul.f32.gmra.mxu0 %v541
  %v563 = vpop.f32.mrf.mxu0
  %v564 = vadd.f32 %v539, %v563
  %565 = vdwg.mxu0
  %v566 = vmax.f32 %v564, 0.0
  %s567 = scalar_lea.vmem %s3, 192
  %v568 = vld [vmem:[%s567] sm:$0xff]
  %v569 = vld [vmem:[%s567 + $0x8] sm:$0xff]
  %v570 = vld [vmem:[%s567 + $0x10] sm:$0xff]
  %v571 = vld [vmem:[%s567 + $0x18] sm:$0xff]
  %v572 = vld [vmem:[%s537 + $0x1] sm:$0x1]
  %v573 = vperm.slane %v572, 0
  %v575 = vsel %vm74, %v566, 0
  %577 = vmatpush.msra.mxu0 0.0
  %578 = vmatpush.msra.mxu0 0.0
  %579 = vmatpush.msra.mxu0 0.0
  %580 = vmatpush.msra.mxu0 0.0
  %581 = vmatpush.msra.mxu0 0.0
  %582 = vmatpush.msra.mxu0 0.0
  %583 = vmatpush.msra.mxu0 0.0
  %584 = vmatpush.msra.mxu0 0.0
  %585 = vmatpush.msra.mxu0 0.0
  %586 = vmatpush.msra.mxu0 0.0
  %587 = vmatpush.msra.mxu0 0.0
  %588 = vmatpush.msra.mxu0 0.0
  %589 = vmatpush.msra.mxu0 %v571
  %590 = vmatpush.msra.mxu0 %v570
  %591 = vmatpush.msra.mxu0 %v569
  %592 = vmatpush.msra.mxu0 %v568
  %593 = vmatmul.f32.gmra.mxu0 %v575
  %v594 = vpop.f32.mrf.mxu0
  %v595 = vadd.f32 %v573, %v594
  %596 = vdwg.mxu0
  %v597 = vmax.f32 %v595, 0.0
  %s598 = scalar_lea.vmem %s3, 224
  %v599 = vld [vmem:[%s598] sm:$0xff]
  %v600 = vld [vmem:[%s598 + $0x8] sm:$0xff]
  %v601 = vld [vmem:[%s598 + $0x10] sm:$0xff]
  %v602 = vld [vmem:[%s598 + $0x18] sm:$0xff]
  %v603 = vld [vmem:[%s537 + $0x2] sm:$0x1]
  %v604 = vperm.slane %v603, 0
  %v606 = vsel %vm74, %v597, 0
  %608 = vmatpush.msra.mxu0 0.0
  %609 = vmatpush.msra.mxu0 0.0
  %610 = vmatpush.msra.mxu0 0.0
  %611 = vmatpush.msra.mxu0 0.0
  %612 = vmatpush.msra.mxu0 0.0
  %613 = vmatpush.msra.mxu0 0.0
  %614 = vmatpush.msra.mxu0 0.0
  %615 = vmatpush.msra.mxu0 0.0
  %616 = vmatpush.msra.mxu0 0.0
  %617 = vmatpush.msra.mxu0 0.0
  %618 = vmatpush.msra.mxu0 0.0
  %619 = vmatpush.msra.mxu0 0.0
  %620 = vmatpush.msra.mxu0 %v602
  %621 = vmatpush.msra.mxu0 %v601
  %622 = vmatpush.msra.mxu0 %v600
  %623 = vmatpush.msra.mxu0 %v599
  %624 = vmatmul.f32.gmra.mxu0 %v606
  %v625 = vpop.f32.mrf.mxu0
  %v626 = vadd.f32 %v604, %v625
  %627 = vdwg.mxu0
  %v628 = vsel %vm129, %v626, -inf
  %629 = vmax.xlane.f32.xlu0 %v628
  %v630 = vpop.xlane.xlu0 %629
  %v631 = vsub.f32 %v626, %v630
  %v632 = vmul.f32 %v631, 1.442695
  %v633 = vpow.pop %v632
  %v634 = vsel %vm129, %v633, 0.0
  %635 = vadd.xlane.f32.xlu0 %v634
  %v636 = vpop.xlane.xlu0 %635
  %v638 = vsel %vm129, %v633, 0
  %640 = vmatpush.msra.mxu0 0.0
  %641 = vmatpush.msra.mxu0 0.0
  %642 = vmatpush.msra.mxu0 0.0
  %643 = vmatpush.msra.mxu0 0.0
  %644 = vmatpush.msra.mxu0 0.0
  %645 = vmatpush.msra.mxu0 0.0
  %646 = vmatpush.msra.mxu0 0.0
  %647 = vmatpush.msra.mxu0 0.0
  %648 = vmatpush.msra.mxu0 0.0
  %649 = vmatpush.msra.mxu0 0.0
  %650 = vmatpush.msra.mxu0 0.0
  %651 = vmatpush.msra.mxu0 0.0
  %652 = vmatpush.msra.mxu0 0.0
  %653 = vmatpush.msra.mxu0 0.0
  %654 = vmatpush.msra.mxu0 0.0
  %655 = vmatpush.msra.mxu0 %v144
  %656 = vmatmul.f32.gmra.mxu0 %v638
  %v657 = vpop.f32.mrf.mxu0
  %v658 = vadd.f32 0.0, %v657
  %659 = vdwg.mxu0
  %v660 = vmul.f32 %v23, %v636
  %662 = vset.pattern.permute.xlu0 3
  %663 = vperm.xlu0 %662, %v660
  %v664 = vpop.permute.xlu0 %663
  %vm666 = vcmp.ge.f32.partialorder %v664, %v658
  %v667 = vsel %vm666, 1, 0
  %v668 = vcvt.s32.f32 %v667
  %v669 = vsel %vm129, %v668, 0.0
  %670 = vadd.xlane.f32.xlu0 %v669
  %v671 = vpop.xlane.xlu0 %670
  %v672 = vcvt.f32.s32.to.zero.pseudo %v671
  %vm673 = vcmp.lt.s32.totalorder %v672, 4
  %v674 = vsel %vm673, %v672, 4
  %vm675 = vcmp.eq.s32.totalorder %v25, %v674
  %v676 = vsel %vm675, 1, 0
  %v677 = vcvt.s32.f32 %v676
  %v678 = vmul.f32 %v677, %v626
  %v679 = vsel %vm129, %v678, 0.0
  %680 = vadd.xlane.f32.xlu0 %v679
  %v681 = vpop.xlane.xlu0 %680
  %v682 = vlog2.pop %v636
  %v683 = vmul.f32 %v682, 0.6931472
  %v684 = vadd.f32 %v683, %v630
  %v685 = vsub.f32 %v681, %v684
  %v686 = vadd.f32 %v521, %v685
  %vm687 = vcmp.eq.s32.totalorder %v25, 3
  %v688 = vsel %vm687, %v674, 0
  %v689 = vadd.s32 %v524, %v688
  %vm690 = vcmask 31744
  %691 = vst.msk [vmem:[%s5] sm:$0xff] %vm690, %v689
  %vm692 = vcmask 7168
  %693 = vst.msk [vmem:[%s6] sm:$0xff] %vm692, %v686
  // Predicated region
  $region22: #{actor_forward.1} parent=0 // pred_check
    _
  $region23: #{actor_forward.1} parent=0 // pred_check_branch
    %695 = sbr.rel (0) target = $region25
  $region24: #{actor_forward.1} parent=0 // pred_region
    _
  $region25: #{actor_forward.1} parent=0 // pred_fallthru
    _
  // Predicated region
  $region26: #{actor_forward.1} parent=0 // pred_check
    _
  $region27: #{actor_forward.1} parent=0 // pred_check_branch
    %697 = sbr.rel (0) target = $region29
  $region28: #{actor_forward.1} parent=0 // pred_region
    _
  $region29: #{actor_forward.1} parent=0 // pred_fallthru
    _
  // Predicated region
  $region30: #{actor_forward.1} parent=0 // pred_check
    _
  $region31: #{actor_forward.1} parent=0 // pred_check_branch
    %699 = sbr.rel (0) target = $region33
  $region32: #{actor_forward.1} parent=0 // pred_region
    _
  $region33: #{actor_forward.1} parent=0 // pred_fallthru
    _
  // Predicated region
  $region34: #{actor_forward.1} parent=0 // pred_check
    _
  $region35: #{actor_forward.1} parent=0 // pred_check_branch
    %701 = sbr.rel (0) target = $region37
  $region36: #{actor_forward.1} parent=0 // pred_region
    _
  $region37: #{actor_forward.1} parent=0 // pred_fallthru
    _

</llo_original>
